<compile_context>
chip_gen: v7x
topology: tpu7x:2x2x1
jax: 0.10.0
libtpu: 0.0.40
codegen_flags: <defaults>
</compile_context>

<pallas_src>
import jax
import jax.numpy as jnp
from jax.experimental import pallas as pl
from jax.experimental.pallas import tpu as pltpu


def _mtl_kernel(
    x_ref,
    w_sb_ref, b_sb_ref,     # shared bottom
    w0_ref, b0_ref,         # fused tower layer 0 (concat along N)
    w1_ref, b1_ref,         # fused tower layer 1 (block-diagonal)
    w2_ref, b2_ref,         # fused tower layer 2 (block-diagonal)
    out_ref,                # (tile_b, 2*output_dim)  [cross | intra]
):
    compute_dtype = w_sb_ref.dtype

    def linear(h, w_ref, b_ref):
        return jnp.dot(h.astype(compute_dtype), w_ref[...],
                       preferred_element_type=jnp.float32) + b_ref[...]

    def relu(h):
        return jnp.maximum(h, 0.0)

    x = x_ref[...]
    # shared bottom: Linear -> ReLU -> (Dropout = identity in eval)
    h = relu(linear(x, w_sb_ref, b_sb_ref))
    # fused towers: (Linear->ReLU) x2 -> Linear, both towers in one GEMM chain
    a = relu(linear(h, w0_ref, b0_ref))
    a = relu(linear(a, w1_ref, b1_ref))
    out = linear(a, w2_ref, b2_ref)
    out_ref[...] = out.astype(out_ref.dtype)


def _block_diag(a, b):
    """[[a, 0], [0, b]] packing so two tower GEMMs become one."""
    dtype = a.dtype
    top = jnp.concatenate([a, jnp.zeros((a.shape[0], b.shape[1]), dtype)], axis=1)
    bot = jnp.concatenate([jnp.zeros((b.shape[0], a.shape[1]), dtype), b], axis=1)
    return jnp.concatenate([top, bot], axis=0)


def mtl_forward(x, params, *, compute_dtype=jnp.bfloat16, tile_b=512):
    """Full MTL forward in one Pallas kernel. Returns (cross_out, intra_out)."""
    batch, input_dim = x.shape
    output_dim = params["w_c2"].shape[1]
    cd = compute_dtype

    # --- host-side weight packing (in production: pack once, reuse per call) ---
    w_sb = params["w_sb"].astype(cd)
    b_sb = params["b_sb"].reshape(1, -1).astype(jnp.float32)
    w0 = jnp.concatenate([params["w_c0"], params["w_i0"]], axis=1).astype(cd)
    b0 = jnp.concatenate([params["b_c0"], params["b_i0"]]).reshape(1, -1).astype(jnp.float32)
    w1 = _block_diag(params["w_c1"], params["w_i1"]).astype(cd)
    b1 = jnp.concatenate([params["b_c1"], params["b_i1"]]).reshape(1, -1).astype(jnp.float32)
    w2 = _block_diag(params["w_c2"], params["w_i2"]).astype(cd)
    b2 = jnp.concatenate([params["b_c2"], params["b_i2"]]).reshape(1, -1).astype(jnp.float32)

    # --- batch tiling: pad rows to a multiple of the tile; weights stay resident ---
    b8 = max(8, ((batch + 7) // 8) * 8)          # sublane-aligned batch
    tile_b = min(tile_b, b8)                     # tile is a multiple of 8
    b_pad = ((b8 + tile_b - 1) // tile_b) * tile_b
    x_p = x.astype(cd)
    if b_pad != batch:
        x_p = jnp.pad(x_p, ((0, b_pad - batch), (0, 0)))

    grid = (b_pad // tile_b,)

    def full_spec(arr):
        return pl.BlockSpec(arr.shape, lambda i: (0,) * arr.ndim)

    out = pl.pallas_call(
        _mtl_kernel,
        out_shape=jax.ShapeDtypeStruct((b_pad, 2 * output_dim), jnp.float32),
        grid=grid,
        in_specs=[
            pl.BlockSpec((tile_b, input_dim), lambda i: (i, 0)),   # x tile
            full_spec(w_sb), full_spec(b_sb),
            full_spec(w0), full_spec(b0),
            full_spec(w1), full_spec(b1),
            full_spec(w2), full_spec(b2),
        ],
        out_specs=pl.BlockSpec((tile_b, 2 * output_dim), lambda i: (i, 0)),
        compiler_params=pltpu.CompilerParams(
            dimension_semantics=("parallel",)),
    )(x_p, w_sb, b_sb, w0, b0, w1, b1, w2, b2)

    out = out[:batch]
    cross_out = out[:, :output_dim]
    intra_out = out[:, output_dim:]
    # Match torch's .squeeze() on the outputs (removes size-1 dims).
    return jnp.squeeze(cross_out), jnp.squeeze(intra_out)


def init_params(key, input_dim, shared_hidden_size,
                intra_tower_hidden_size, cross_tower_hidden_size, output_dim):
    """Deterministic PyTorch-style uniform(-1/sqrt(fan_in), 1/sqrt(fan_in)) init."""
    dims = {
        "sb": (input_dim, shared_hidden_size),
        "c0": (shared_hidden_size, cross_tower_hidden_size[0]),
        "c1": (cross_tower_hidden_size[0], cross_tower_hidden_size[1]),
        "c2": (cross_tower_hidden_size[1], output_dim),
        "i0": (shared_hidden_size, intra_tower_hidden_size[0]),
        "i1": (intra_tower_hidden_size[0], intra_tower_hidden_size[1]),
        "i2": (intra_tower_hidden_size[1], output_dim),
    }
    params = {}
    keys = jax.random.split(key, 2 * len(dims))
    for idx, (name, (fan_in, fan_out)) in enumerate(dims.items()):
        bound = 1.0 / jnp.sqrt(jnp.float32(fan_in))
        params[f"w_{name}"] = jax.random.uniform(
            keys[2 * idx], (fan_in, fan_out), jnp.float32, -bound, bound)
        params[f"b_{name}"] = jax.random.uniform(
            keys[2 * idx + 1], (fan_out,), jnp.float32, -bound, bound)
    return params


if __name__ == "__main__":
    key = jax.random.PRNGKey(0)
    k_x, k_p = jax.random.split(key)

    batch = 8
    input_dim = 32
    shared_hidden_size = 32
    intra_tower_hidden_size = (32, 16)
    cross_tower_hidden_size = (32, 16)
    output_dim = 1

    x = jax.random.normal(k_x, (batch, input_dim), jnp.float32)
    params = init_params(k_p, input_dim, shared_hidden_size,
                         intra_tower_hidden_size, cross_tower_hidden_size,
                         output_dim)

    cross_out, intra_out = mtl_forward(x, params)
    jax.block_until_ready((cross_out, intra_out))

    # Pure-JAX f32 reference of the original (un-fused) module.
    def ref_forward(x, p):
        relu = lambda h: jnp.maximum(h, 0.0)
        h = relu(x @ p["w_sb"] + p["b_sb"])
        c = relu(h @ p["w_c0"] + p["b_c0"])
        c = relu(c @ p["w_c1"] + p["b_c1"])
        c = c @ p["w_c2"] + p["b_c2"]
        t = relu(h @ p["w_i0"] + p["b_i0"])
        t = relu(t @ p["w_i1"] + p["b_i1"])
        t = t @ p["w_i2"] + p["b_i2"]
        return jnp.squeeze(c), jnp.squeeze(t)

    c_ref, t_ref = ref_forward(x, params)
    # Kernel uses bf16 inputs/weights with f32 accumulation -> loose tolerance.
    assert jnp.allclose(cross_out, c_ref, atol=5e-2, rtol=5e-2), "cross mismatch"
    assert jnp.allclose(intra_out, t_ref, atol=5e-2, rtol=5e-2), "intra mismatch"

    print("KERNEL_OK")
</pallas_src>

<mosaic_0001>
module attributes {stable_mosaic.version = 11 : i64} {
  func.func @_mtl_kernel(%arg0: i32, %arg1: memref<8x32xbf16, #tpu.memory_space<vmem>>, %arg2: memref<32x32xbf16, #tpu.memory_space<vmem>>, %arg3: memref<1x32xf32, #tpu.memory_space<vmem>>, %arg4: memref<32x64xbf16, #tpu.memory_space<vmem>>, %arg5: memref<1x64xf32, #tpu.memory_space<vmem>>, %arg6: memref<64x32xbf16, #tpu.memory_space<vmem>>, %arg7: memref<1x32xf32, #tpu.memory_space<vmem>>, %arg8: memref<32x2xbf16, #tpu.memory_space<vmem>>, %arg9: memref<1x2xf32, #tpu.memory_space<vmem>>, %arg10: memref<8x2xf32, #tpu.memory_space<vmem>>) attributes {dimension_semantics = [#tpu.dimension_semantics<parallel>], iteration_bounds = array<i64: 1>, scalar_prefetch = 0 : i64, scratch_operands = 0 : i64, tpu.core_type = #tpu.core_type<tc>, window_params = [{transform_indices = @transform_0, window_bounds = array<i64: 8, 32>}, {pipeline_mode = #tpu.pipeline_mode<synchronous>, transform_indices = @transform_1, window_bounds = array<i64: 32, 32>}, {pipeline_mode = #tpu.pipeline_mode<synchronous>, transform_indices = @transform_2, window_bounds = array<i64: 1, 32>}, {pipeline_mode = #tpu.pipeline_mode<synchronous>, transform_indices = @transform_3, window_bounds = array<i64: 32, 64>}, {pipeline_mode = #tpu.pipeline_mode<synchronous>, transform_indices = @transform_4, window_bounds = array<i64: 1, 64>}, {pipeline_mode = #tpu.pipeline_mode<synchronous>, transform_indices = @transform_5, window_bounds = array<i64: 64, 32>}, {pipeline_mode = #tpu.pipeline_mode<synchronous>, transform_indices = @transform_6, window_bounds = array<i64: 1, 32>}, {pipeline_mode = #tpu.pipeline_mode<synchronous>, transform_indices = @transform_7, window_bounds = array<i64: 32, 2>}, {pipeline_mode = #tpu.pipeline_mode<synchronous>, transform_indices = @transform_8, window_bounds = array<i64: 1, 2>}, {transform_indices = @transform_9, window_bounds = array<i64: 8, 2>}]} {
    %c0 = arith.constant 0 : index
    %c0_0 = arith.constant 0 : index
    %0 = vector.load %arg1[%c0, %c0_0] : memref<8x32xbf16, #tpu.memory_space<vmem>>, vector<8x32xbf16>
    %c0_1 = arith.constant 0 : index
    %c0_2 = arith.constant 0 : index
    %1 = vector.load %arg2[%c0_1, %c0_2] : memref<32x32xbf16, #tpu.memory_space<vmem>>, vector<32x32xbf16>
    %cst = arith.constant dense<0.000000e+00> : vector<8x32xf32>
    %2 = tpu.matmul %0, %1, %cst {dimension_numbers = #tpu.dot_dimension_numbers<[1], [0], [0], [1], [0, 0, 1, 1], [], []>} : vector<8x32xbf16>, vector<32x32xbf16>, vector<8x32xf32> -> vector<8x32xf32>
    %c0_3 = arith.constant 0 : index
    %c0_4 = arith.constant 0 : index
    %3 = vector.load %arg3[%c0_3, %c0_4] : memref<1x32xf32, #tpu.memory_space<vmem>>, vector<1x32xf32>
    %4 = vector.broadcast %3 : vector<1x32xf32> to vector<8x32xf32>
    %5 = arith.addf %2, %4 : vector<8x32xf32>
    %cst_5 = arith.constant 0.000000e+00 : f32
    %6 = vector.broadcast %cst_5 : f32 to vector<8x32xf32>
    %7 = arith.maximumf %5, %6 : vector<8x32xf32>
    %8 = arith.truncf %7 : vector<8x32xf32> to vector<8x32xbf16>
    %c0_6 = arith.constant 0 : index
    %c0_7 = arith.constant 0 : index
    %9 = vector.load %arg4[%c0_6, %c0_7] : memref<32x64xbf16, #tpu.memory_space<vmem>>, vector<32x64xbf16>
    %cst_8 = arith.constant dense<0.000000e+00> : vector<8x64xf32>
    %10 = tpu.matmul %8, %9, %cst_8 {dimension_numbers = #tpu.dot_dimension_numbers<[1], [0], [0], [1], [0, 0, 1, 1], [], []>} : vector<8x32xbf16>, vector<32x64xbf16>, vector<8x64xf32> -> vector<8x64xf32>
    %c0_9 = arith.constant 0 : index
    %c0_10 = arith.constant 0 : index
    %11 = vector.load %arg5[%c0_9, %c0_10] : memref<1x64xf32, #tpu.memory_space<vmem>>, vector<1x64xf32>
    %12 = vector.broadcast %11 : vector<1x64xf32> to vector<8x64xf32>
    %13 = arith.addf %10, %12 : vector<8x64xf32>
    %cst_11 = arith.constant 0.000000e+00 : f32
    %14 = vector.broadcast %cst_11 : f32 to vector<8x64xf32>
    %15 = arith.maximumf %13, %14 : vector<8x64xf32>
    %16 = arith.truncf %15 : vector<8x64xf32> to vector<8x64xbf16>
    %c0_12 = arith.constant 0 : index
    %c0_13 = arith.constant 0 : index
    %17 = vector.load %arg6[%c0_12, %c0_13] : memref<64x32xbf16, #tpu.memory_space<vmem>>, vector<64x32xbf16>
    %cst_14 = arith.constant dense<0.000000e+00> : vector<8x32xf32>
    %18 = tpu.matmul %16, %17, %cst_14 {dimension_numbers = #tpu.dot_dimension_numbers<[1], [0], [0], [1], [0, 0, 1, 1], [], []>} : vector<8x64xbf16>, vector<64x32xbf16>, vector<8x32xf32> -> vector<8x32xf32>
    %c0_15 = arith.constant 0 : index
    %c0_16 = arith.constant 0 : index
    %19 = vector.load %arg7[%c0_15, %c0_16] : memref<1x32xf32, #tpu.memory_space<vmem>>, vector<1x32xf32>
    %20 = vector.broadcast %19 : vector<1x32xf32> to vector<8x32xf32>
    %21 = arith.addf %18, %20 : vector<8x32xf32>
    %cst_17 = arith.constant 0.000000e+00 : f32
    %22 = vector.broadcast %cst_17 : f32 to vector<8x32xf32>
    %23 = arith.maximumf %21, %22 : vector<8x32xf32>
    %24 = arith.truncf %23 : vector<8x32xf32> to vector<8x32xbf16>
    %c0_18 = arith.constant 0 : index
    %c0_19 = arith.constant 0 : index
    %25 = vector.load %arg8[%c0_18, %c0_19] : memref<32x2xbf16, #tpu.memory_space<vmem>>, vector<32x2xbf16>
    %cst_20 = arith.constant dense<0.000000e+00> : vector<8x2xf32>
    %26 = tpu.matmul %24, %25, %cst_20 {dimension_numbers = #tpu.dot_dimension_numbers<[1], [0], [0], [1], [0, 0, 1, 1], [], []>} : vector<8x32xbf16>, vector<32x2xbf16>, vector<8x2xf32> -> vector<8x2xf32>
    %c0_21 = arith.constant 0 : index
    %c0_22 = arith.constant 0 : index
    %27 = vector.load %arg9[%c0_21, %c0_22] : memref<1x2xf32, #tpu.memory_space<vmem>>, vector<1x2xf32>
    %28 = vector.broadcast %27 : vector<1x2xf32> to vector<8x2xf32>
    %29 = arith.addf %26, %28 : vector<8x2xf32>
    %c0_23 = arith.constant 0 : index
    %c0_24 = arith.constant 0 : index
    %30 = vector.load %arg10[%c0_23, %c0_24] : memref<8x2xf32, #tpu.memory_space<vmem>>, vector<8x2xf32>
    tpu.vector_store %arg10[%c0_23, %c0_24], %29 {strides = array<i32>} : memref<8x2xf32, #tpu.memory_space<vmem>>, vector<8x2xf32>,
    return
  }
  func.func @transform_0(%arg0: i32) -> (i32, i32) {
    %c0_i32 = arith.constant 0 : i32
    %c0_i32_0 = arith.constant 0 : i32
    return %arg0, %c0_i32 : i32, i32
  }
  func.func @transform_1(%arg0: i32) -> (i32, i32) {
    %c0_i32 = arith.constant 0 : i32
    %c0_i32_0 = arith.constant 0 : i32
    %c0_i32_1 = arith.constant 0 : i32
    return %c0_i32, %c0_i32_0 : i32, i32
  }
  func.func @transform_2(%arg0: i32) -> (i32, i32) {
    %c0_i32 = arith.constant 0 : i32
    %c0_i32_0 = arith.constant 0 : i32
    %c0_i32_1 = arith.constant 0 : i32
    return %c0_i32, %c0_i32_0 : i32, i32
  }
  func.func @transform_3(%arg0: i32) -> (i32, i32) {
    %c0_i32 = arith.constant 0 : i32
    %c0_i32_0 = arith.constant 0 : i32
    %c0_i32_1 = arith.constant 0 : i32
    return %c0_i32, %c0_i32_0 : i32, i32
  }
  func.func @transform_4(%arg0: i32) -> (i32, i32) {
    %c0_i32 = arith.constant 0 : i32
    %c0_i32_0 = arith.constant 0 : i32
    %c0_i32_1 = arith.constant 0 : i32
    return %c0_i32, %c0_i32_0 : i32, i32
  }
  func.func @transform_5(%arg0: i32) -> (i32, i32) {
    %c0_i32 = arith.constant 0 : i32
    %c0_i32_0 = arith.constant 0 : i32
    %c0_i32_1 = arith.constant 0 : i32
    return %c0_i32, %c0_i32_0 : i32, i32
  }
  func.func @transform_6(%arg0: i32) -> (i32, i32) {
    %c0_i32 = arith.constant 0 : i32
    %c0_i32_0 = arith.constant 0 : i32
    %c0_i32_1 = arith.constant 0 : i32
    return %c0_i32, %c0_i32_0 : i32, i32
  }
  func.func @transform_7(%arg0: i32) -> (i32, i32) {
    %c0_i32 = arith.constant 0 : i32
    %c0_i32_0 = arith.constant 0 : i32
    %c0_i32_1 = arith.constant 0 : i32
    return %c0_i32, %c0_i32_0 : i32, i32
  }
  func.func @transform_8(%arg0: i32) -> (i32, i32) {
    %c0_i32 = arith.constant 0 : i32
    %c0_i32_0 = arith.constant 0 : i32
    %c0_i32_1 = arith.constant 0 : i32
    return %c0_i32, %c0_i32_0 : i32, i32
  }
  func.func @transform_9(%arg0: i32) -> (i32, i32) {
    %c0_i32 = arith.constant 0 : i32
    %c0_i32_0 = arith.constant 0 : i32
    return %arg0, %c0_i32 : i32, i32
  }
}

</mosaic_0001>

<llo_original>
// kernel: tpu_custom_call.1
$region0: #{tpu_custom_call.1}
  #allocation0 [shape = 'u32[]', space=smem, size = 0x4, offset = 0x4, fixed_abs, tag = 'smem constant byte address 0x4 - core index']
  #allocation1 [shape = 'u32[144,128]{1,0:T(1,128)}', space=vmem, size = 0x12000, scoped, tag = 'internal scratch']
  %s0 = inlined_call_operand.vmem [shape: bf16[8,32], index: 0, kind: input, shape index: {}]
  %s1 = inlined_call_operand.vmem [shape: bf16[32,32], index: 1, kind: input, shape index: {}]
  %s2 = inlined_call_operand.vmem [shape: f32[1,32], index: 2, kind: input, shape index: {}]
  %s3 = inlined_call_operand.vmem [shape: bf16[32,64], index: 3, kind: input, shape index: {}]
  %s4 = inlined_call_operand.vmem [shape: f32[1,64], index: 4, kind: input, shape index: {}]
  %s5 = inlined_call_operand.vmem [shape: bf16[64,32], index: 5, kind: input, shape index: {}]
  %s6 = inlined_call_operand.vmem [shape: f32[1,32], index: 6, kind: input, shape index: {}]
  %s7 = inlined_call_operand.vmem [shape: bf16[32,2], index: 7, kind: input, shape index: {}]
  %s8 = inlined_call_operand.vmem [shape: f32[1,2], index: 8, kind: input, shape index: {}]
  %s9 = inlined_call_operand.vmem [shape: f32[8,2], index: 9, kind: output, shape index: {}]
  %s10 = sld [smem:[#allocation0]]
  $region46: #{tpu_custom_call.1} parent=0
    _
  %s12 = ssub.s32 1, %s10
  %s13 = scalar_select 0, %s12, %s10
  // Predicated region
  $region2: #{tpu_custom_call.1} parent=0 // pred_check
    _
  $region3: #{tpu_custom_call.1} parent=0 // pred_check_branch
    %15 = sbr.rel (0) target = $region5
  $region4: #{tpu_custom_call.1} parent=0 // pred_region
    _
  $region5: #{tpu_custom_call.1} parent=0 // pred_fallthru
    _
  // Predicated region
  $region6: #{tpu_custom_call.1} parent=0 // pred_check
    _
  $region7: #{tpu_custom_call.1} parent=0 // pred_check_branch
    %17 = sbr.rel (0) target = $region9
  $region8: #{tpu_custom_call.1} parent=0 // pred_region
    _
  $region9: #{tpu_custom_call.1} parent=0 // pred_fallthru
    _
  // Predicated region
  $region10: #{tpu_custom_call.1} parent=0 // pred_check
    _
  $region11: #{tpu_custom_call.1} parent=0 // pred_check_branch
    %19 = sbr.rel (0) target = $region13
  $region12: #{tpu_custom_call.1} parent=0 // pred_region
    _
  $region13: #{tpu_custom_call.1} parent=0 // pred_fallthru
    _
  // Predicated region
  $region14: #{tpu_custom_call.1} parent=0 // pred_check
    _
  $region15: #{tpu_custom_call.1} parent=0 // pred_check_branch
    %21 = sbr.rel (0) target = $region17
  $region16: #{tpu_custom_call.1} parent=0 // pred_region
    _
  $region17: #{tpu_custom_call.1} parent=0 // pred_fallthru
    _
  // Predicated region
  $region18: #{tpu_custom_call.1} parent=0 // pred_check
    _
  $region19: #{tpu_custom_call.1} parent=0 // pred_check_branch
    %23 = sbr.rel (0) target = $region21
  $region20: #{tpu_custom_call.1} parent=0 // pred_region
    _
  $region21: #{tpu_custom_call.1} parent=0 // pred_fallthru
    _
  // Predicated region
  $region22: #{tpu_custom_call.1} parent=0 // pred_check
    _
  $region23: #{tpu_custom_call.1} parent=0 // pred_check_branch
    %25 = sbr.rel (0) target = $region25
  $region24: #{tpu_custom_call.1} parent=0 // pred_region
    _
  $region25: #{tpu_custom_call.1} parent=0 // pred_fallthru
    _
  // Predicated region
  $region26: #{tpu_custom_call.1} parent=0 // pred_check
    _
  $region27: #{tpu_custom_call.1} parent=0 // pred_check_branch
    %27 = sbr.rel (0) target = $region29
  $region28: #{tpu_custom_call.1} parent=0 // pred_region
    _
  $region29: #{tpu_custom_call.1} parent=0 // pred_fallthru
    _
  // Predicated region
  $region30: #{tpu_custom_call.1} parent=0 // pred_check
    _
  $region31: #{tpu_custom_call.1} parent=0 // pred_check_branch
    %29 = sbr.rel (0) target = $region33
  $region32: #{tpu_custom_call.1} parent=0 // pred_region
    _
  $region33: #{tpu_custom_call.1} parent=0 // pred_fallthru
    _
  // Predicated region
  $region34: #{tpu_custom_call.1} parent=0 // pred_check
    _
  $region35: #{tpu_custom_call.1} parent=0 // pred_check_branch
    %31 = sbr.rel (0) target = $region37
  $region36: #{tpu_custom_call.1} parent=0 // pred_region
    _
  $region37: #{tpu_custom_call.1} parent=0 // pred_fallthru
    _
  %v33 = vld [vmem:[%s0] sm:$0xf]
  %v34 = vld [vmem:[%s1] sm:$0xf]
  %v35 = vld [vmem:[%s1 + $0x4] sm:$0xf]
  %v36 = vld [vmem:[%s1 + $0x8] sm:$0xf]
  %v37 = vld [vmem:[%s1 + $0xc] sm:$0xf]
  %v38 = vld [vmem:[%s2] sm:$0x1]
  %v40 = vlaneseq
  %v41 = vshrl.u32 %v40, 7
  %v42 = vsub.s32 0, %v41
  %v43 = vrot.slane %v38, %v42
  %v49 = vunpack.c.l.b16 %v34
  %v50 = vunpack.c.l.b16 %v35
  %v51 = vunpack.c.l.b16 %v36
  %v52 = vunpack.c.l.b16 %v37
  %v53 = vpack.c.b16 %v50, %v49
  %v54 = vpack.c.b16 %v52, %v51
  %vm57 = vcmask 261120
  %v59 = vsel %vm57, %v33, 0
  %61 = vmatprep.subr.bf16.mxu0 0
  %62 = vmatpush1.bf16.msra.mxu0 %v53
  %63 = vmatprep.subr.bf16.mxu0 0
  %64 = vmatpush1.bf16.msra.mxu0 %v54
  %65 = vmatprep.subr.bf16.mxu0 0
  %66 = vmatpush1.bf16.msra.mxu0 0
  %67 = vmatprep.subr.bf16.mxu0 0
  %68 = vmatpush1.bf16.msra.mxu0 0
  %69 = vmatprep.subr.bf16.mxu0 0
  %70 = vmatpush1.bf16.msra.mxu0 0
  %71 = vmatprep.subr.bf16.mxu0 0
  %72 = vmatpush1.bf16.msra.mxu0 0
  %73 = vmatprep.subr.bf16.mxu0 0
  %74 = vmatpush1.bf16.msra.mxu0 0
  %75 = vmatprep.subr.bf16.mxu0 0
  %76 = vmatpush1.bf16.msra.mxu0 0
  %77 = vmatprep.subr.bf16.mxu0 0
  %78 = vmatpush1.bf16.msra.mxu0 0
  %79 = vmatprep.subr.bf16.mxu0 0
  %80 = vmatpush1.bf16.msra.mxu0 0
  %81 = vmatprep.subr.bf16.mxu0 0
  %82 = vmatpush1.bf16.msra.mxu0 0
  %83 = vmatprep.subr.bf16.mxu0 0
  %84 = vmatpush1.bf16.msra.mxu0 0
  %85 = vmatprep.subr.bf16.mxu0 0
  %86 = vmatpush1.bf16.msra.mxu0 0
  %87 = vmatprep.subr.bf16.mxu0 0
  %88 = vmatpush1.bf16.msra.mxu0 0
  %89 = vmatprep.subr.bf16.mxu0 0
  %90 = vmatpush1.bf16.msra.mxu0 0
  %91 = vmatprep.subr.bf16.mxu0 0
  %92 = vmatpush1.bf16.msra.mxu0 0
  %93 = vmatprep.mubr.bf16.mxu0 0
  %94 = vmatmul.mubr.bf16.gmra.mrb[0].mxu0 %v59
  %v95 = vpop.f32.mrb[0].mxu0
  %v96 = vadd.f32 %v43, %v95
  %v97 = vpop.f32.mrb[0].mxu0
  %v98 = vpop.f32.mrb[0].mxu0
  %v99 = vpop.f32.mrb[0].mxu0
  %100 = vdwg.mxu0
  %v101 = vmax.f32 %v96, 0.0
  %v102 = vpack.c.bf16 %v101, %v101
  %v103 = vld [vmem:[%s3] sm:$0xf]
  %v104 = vld [vmem:[%s3 + $0x4] sm:$0xf]
  %v105 = vld [vmem:[%s3 + $0x8] sm:$0xf]
  %v106 = vld [vmem:[%s3 + $0xc] sm:$0xf]
  %v107 = vld [vmem:[%s4] sm:$0x1]
  %v109 = vlaneseq
  %v110 = vshrl.u32 %v109, 7
  %v111 = vsub.s32 0, %v110
  %v112 = vrot.slane %v107, %v111
  %v118 = vunpack.c.l.b16 %v103
  %v119 = vunpack.c.l.b16 %v104
  %v120 = vunpack.c.l.b16 %v105
  %v121 = vunpack.c.l.b16 %v106
  %v122 = vpack.c.b16 %v119, %v118
  %v123 = vpack.c.b16 %v121, %v120
  %v127 = vsel %vm57, %v102, 0
  %129 = vmatprep.subr.bf16.mxu0 0
  %130 = vmatpush1.bf16.msra.mxu0 %v122
  %131 = vmatprep.subr.bf16.mxu0 0
  %132 = vmatpush1.bf16.msra.mxu0 %v123
  %133 = vmatprep.subr.bf16.mxu0 0
  %134 = vmatpush1.bf16.msra.mxu0 0
  %135 = vmatprep.subr.bf16.mxu0 0
  %136 = vmatpush1.bf16.msra.mxu0 0
  %137 = vmatprep.subr.bf16.mxu0 0
  %138 = vmatpush1.bf16.msra.mxu0 0
  %139 = vmatprep.subr.bf16.mxu0 0
  %140 = vmatpush1.bf16.msra.mxu0 0
  %141 = vmatprep.subr.bf16.mxu0 0
  %142 = vmatpush1.bf16.msra.mxu0 0
  %143 = vmatprep.subr.bf16.mxu0 0
  %144 = vmatpush1.bf16.msra.mxu0 0
  %145 = vmatprep.subr.bf16.mxu0 0
  %146 = vmatpush1.bf16.msra.mxu0 0
  %147 = vmatprep.subr.bf16.mxu0 0
  %148 = vmatpush1.bf16.msra.mxu0 0
  %149 = vmatprep.subr.bf16.mxu0 0
  %150 = vmatpush1.bf16.msra.mxu0 0
  %151 = vmatprep.subr.bf16.mxu0 0
  %152 = vmatpush1.bf16.msra.mxu0 0
  %153 = vmatprep.subr.bf16.mxu0 0
  %154 = vmatpush1.bf16.msra.mxu0 0
  %155 = vmatprep.subr.bf16.mxu0 0
  %156 = vmatpush1.bf16.msra.mxu0 0
  %157 = vmatprep.subr.bf16.mxu0 0
  %158 = vmatpush1.bf16.msra.mxu0 0
  %159 = vmatprep.subr.bf16.mxu0 0
  %160 = vmatpush1.bf16.msra.mxu0 0
  %161 = vmatprep.mubr.bf16.mxu0 0
  %162 = vmatmul.mubr.bf16.gmra.mrb[0].mxu0 %v127
  %v163 = vpop.f32.mrb[0].mxu0
  %v164 = vadd.f32 %v112, %v163
  %v165 = vpop.f32.mrb[0].mxu0
  %v166 = vpop.f32.mrb[0].mxu0
  %v167 = vpop.f32.mrb[0].mxu0
  %168 = vdwg.mxu0
  %v169 = vmax.f32 %v164, 0.0
  %v170 = vpack.c.bf16 %v169, %v169
  %v171 = vld [vmem:[%s5] sm:$0xf]
  %v172 = vld [vmem:[%s5 + $0x4] sm:$0xf]
  %v173 = vld [vmem:[%s5 + $0x8] sm:$0xf]
  %v174 = vld [vmem:[%s5 + $0xc] sm:$0xf]
  %v175 = vld [vmem:[%s5 + $0x10] sm:$0xf]
  %v176 = vld [vmem:[%s5 + $0x14] sm:$0xf]
  %v177 = vld [vmem:[%s5 + $0x18] sm:$0xf]
  %v178 = vld [vmem:[%s5 + $0x1c] sm:$0xf]
  %v179 = vld [vmem:[%s6] sm:$0x1]
  %v181 = vlaneseq
  %v182 = vshrl.u32 %v181, 7
  %v183 = vsub.s32 0, %v182
  %v184 = vrot.slane %v179, %v183
  %v194 = vunpack.c.l.b16 %v171
  %v195 = vunpack.c.l.b16 %v172
  %v196 = vunpack.c.l.b16 %v173
  %v197 = vunpack.c.l.b16 %v174
  %v198 = vunpack.c.l.b16 %v175
  %v199 = vunpack.c.l.b16 %v176
  %v200 = vunpack.c.l.b16 %v177
  %v201 = vunpack.c.l.b16 %v178
  %v202 = vpack.c.b16 %v195, %v194
  %v203 = vpack.c.b16 %v197, %v196
  %v204 = vpack.c.b16 %v199, %v198
  %v205 = vpack.c.b16 %v201, %v200
  %vm210 = vcmask 523264
  %v212 = vsel %vm210, %v170, 0
  %214 = vmatprep.subr.bf16.mxu0 0
  %215 = vmatpush1.bf16.msra.mxu0 %v202
  %216 = vmatprep.subr.bf16.mxu0 0
  %217 = vmatpush1.bf16.msra.mxu0 %v203
  %218 = vmatprep.subr.bf16.mxu0 0
  %219 = vmatpush1.bf16.msra.mxu0 %v204
  %220 = vmatprep.subr.bf16.mxu0 0
  %221 = vmatpush1.bf16.msra.mxu0 %v205
  %222 = vmatprep.subr.bf16.mxu0 0
  %223 = vmatpush1.bf16.msra.mxu0 0
  %224 = vmatprep.subr.bf16.mxu0 0
  %225 = vmatpush1.bf16.msra.mxu0 0
  %226 = vmatprep.subr.bf16.mxu0 0
  %227 = vmatpush1.bf16.msra.mxu0 0
  %228 = vmatprep.subr.bf16.mxu0 0
  %229 = vmatpush1.bf16.msra.mxu0 0
  %230 = vmatprep.subr.bf16.mxu0 0
  %231 = vmatpush1.bf16.msra.mxu0 0
  %232 = vmatprep.subr.bf16.mxu0 0
  %233 = vmatpush1.bf16.msra.mxu0 0
  %234 = vmatprep.subr.bf16.mxu0 0
  %235 = vmatpush1.bf16.msra.mxu0 0
  %236 = vmatprep.subr.bf16.mxu0 0
  %237 = vmatpush1.bf16.msra.mxu0 0
  %238 = vmatprep.subr.bf16.mxu0 0
  %239 = vmatpush1.bf16.msra.mxu0 0
  %240 = vmatprep.subr.bf16.mxu0 0
  %241 = vmatpush1.bf16.msra.mxu0 0
  %242 = vmatprep.subr.bf16.mxu0 0
  %243 = vmatpush1.bf16.msra.mxu0 0
  %244 = vmatprep.subr.bf16.mxu0 0
  %245 = vmatpush1.bf16.msra.mxu0 0
  %246 = vmatprep.mubr.bf16.mxu0 0
  %247 = vmatmul.mubr.bf16.gmra.mrb[0].mxu0 %v212
  %v248 = vpop.f32.mrb[0].mxu0
  %v249 = vadd.f32 %v184, %v248
  %v250 = vpop.f32.mrb[0].mxu0
  %v251 = vpop.f32.mrb[0].mxu0
  %v252 = vpop.f32.mrb[0].mxu0
  %253 = vdwg.mxu0
  %v254 = vmax.f32 %v249, 0.0
  %v255 = vpack.c.bf16 %v254, %v254
  %v256 = vld [vmem:[%s7] sm:$0xf]
  %v257 = vld [vmem:[%s7 + $0x4] sm:$0xf]
  %v258 = vld [vmem:[%s7 + $0x8] sm:$0xf]
  %v259 = vld [vmem:[%s7 + $0xc] sm:$0xf]
  %v260 = vld [vmem:[%s8] sm:$0x1]
  %v262 = vlaneseq
  %v263 = vshrl.u32 %v262, 7
  %v264 = vsub.s32 0, %v263
  %v265 = vrot.slane %v260, %v264
  %v271 = vunpack.c.l.b16 %v256
  %v272 = vunpack.c.l.b16 %v257
  %v273 = vunpack.c.l.b16 %v258
  %v274 = vunpack.c.l.b16 %v259
  %v275 = vpack.c.b16 %v272, %v271
  %v276 = vpack.c.b16 %v274, %v273
  %v280 = vsel %vm57, %v255, 0
  %282 = vmatprep.subr.bf16.mxu0 0
  %283 = vmatpush1.bf16.msra.mxu0 %v275
  %284 = vmatprep.subr.bf16.mxu0 0
  %285 = vmatpush1.bf16.msra.mxu0 %v276
  %286 = vmatprep.subr.bf16.mxu0 0
  %287 = vmatpush1.bf16.msra.mxu0 0
  %288 = vmatprep.subr.bf16.mxu0 0
  %289 = vmatpush1.bf16.msra.mxu0 0
  %290 = vmatprep.subr.bf16.mxu0 0
  %291 = vmatpush1.bf16.msra.mxu0 0
  %292 = vmatprep.subr.bf16.mxu0 0
  %293 = vmatpush1.bf16.msra.mxu0 0
  %294 = vmatprep.subr.bf16.mxu0 0
  %295 = vmatpush1.bf16.msra.mxu0 0
  %296 = vmatprep.subr.bf16.mxu0 0
  %297 = vmatpush1.bf16.msra.mxu0 0
  %298 = vmatprep.subr.bf16.mxu0 0
  %299 = vmatpush1.bf16.msra.mxu0 0
  %300 = vmatprep.subr.bf16.mxu0 0
  %301 = vmatpush1.bf16.msra.mxu0 0
  %302 = vmatprep.subr.bf16.mxu0 0
  %303 = vmatpush1.bf16.msra.mxu0 0
  %304 = vmatprep.subr.bf16.mxu0 0
  %305 = vmatpush1.bf16.msra.mxu0 0
  %306 = vmatprep.subr.bf16.mxu0 0
  %307 = vmatpush1.bf16.msra.mxu0 0
  %308 = vmatprep.subr.bf16.mxu0 0
  %309 = vmatpush1.bf16.msra.mxu0 0
  %310 = vmatprep.subr.bf16.mxu0 0
  %311 = vmatpush1.bf16.msra.mxu0 0
  %312 = vmatprep.subr.bf16.mxu0 0
  %313 = vmatpush1.bf16.msra.mxu0 0
  %314 = vmatprep.mubr.bf16.mxu0 0
  %315 = vmatmul.mubr.bf16.gmra.mrb[0].mxu0 %v280
  %v316 = vpop.f32.mrb[0].mxu0
  %v317 = vadd.f32 %v265, %v316
  %v318 = vpop.f32.mrb[0].mxu0
  %v319 = vpop.f32.mrb[0].mxu0
  %v320 = vpop.f32.mrb[0].mxu0
  %321 = vdwg.mxu0
  %vm322 = vcmask 15360
  %323 = vst.msk [vmem:[%s9] sm:$0xff] %vm322, %v317
  // Predicated region
  $region38: #{tpu_custom_call.1} parent=0 // pred_check
    _
  $region39: #{tpu_custom_call.1} parent=0 // pred_check_branch
    %325 = sbr.rel (0) target = $region41
  $region40: #{tpu_custom_call.1} parent=0 // pred_region
    _
  $region41: #{tpu_custom_call.1} parent=0 // pred_fallthru
    _
  // Predicated region
  $region42: #{tpu_custom_call.1} parent=0 // pred_check
    _
  $region43: #{tpu_custom_call.1} parent=0 // pred_check_branch
    %327 = sbr.rel (0) target = $region45
  $region44: #{tpu_custom_call.1} parent=0 // pred_region
    _
  $region45: #{tpu_custom_call.1} parent=0 // pred_fallthru
    _

</llo_original>
